<compile_context>
chip_gen: v5e
topology: v5e:2x2
jax: 0.10.0
libtpu: 0.0.40
codegen_flags: <defaults>
</compile_context>

<pallas_src>
import jax
import jax.numpy as jnp
from jax.experimental import pallas as pl
from jax.experimental.pallas import tpu as pltpu


def _round_up(n, m):
    return ((n + m - 1) // m) * m


def _leaky_relu(x, negative_slope=0.2):
    return jnp.where(x > 0, x, negative_slope * x)


def _tpu_info():
    """Best-effort hardware query; conservative fallbacks if unavailable."""
    vmem_bytes = 64 << 20   # smallest per-TC VMEM across v5e/v6e/v7x
    num_cores = 1
    try:
        info = pltpu.get_tpu_info()
        vmem_bytes = int(getattr(info, "vmem_capacity_bytes", vmem_bytes))
        num_cores = int(getattr(info, "num_cores", num_cores) or num_cores)
    except Exception:
        pass
    return vmem_bytes, num_cores


def _pick_batch_tile(B, batch_tile, num_cores):
    """Batch tile: multiple of 16 (bf16 sublane packing); split across cores
    only when there are >=2 TensorCores and each half stays MXU-sized."""
    b16 = _round_up(B, 16)
    if b16 <= batch_tile:
        bt = b16
        if num_cores >= 2 and bt >= 256:
            bt = _round_up(bt // 2, 128)
        return bt
    if batch_tile >= 256:
        return _round_up(batch_tile, 256)   # MXU / pipeline friendly large tile
    return _round_up(batch_tile, 16)


# --------------------------------------------------------------------------- #
# Kernel
# --------------------------------------------------------------------------- #
def encoder_kernel(x_ref, w1_ref, b1_ref, w2_ref, b2_ref, wh_ref, bh_ref,
                   out_ref):
    # x arrives as raw f32; narrow to the MXU dtype on the VPU (hidden work).
    x = x_ref[...].astype(w1_ref.dtype)

    # linear1 + LeakyReLU(0.2)  -- f32 accumulation, f32 elementwise
    h = jnp.dot(x, w1_ref[...], preferred_element_type=jnp.float32) + b1_ref[...]
    h = _leaky_relu(h)

    # linear2 + LeakyReLU(0.2)  -- narrow only the MXU input
    h = jnp.dot(h.astype(w2_ref.dtype), w2_ref[...],
                preferred_element_type=jnp.float32) + b2_ref[...]
    h = _leaky_relu(h)

    # fused mu||logVar head, written as one 128-lane-dense slab
    out = jnp.dot(h.astype(wh_ref.dtype), wh_ref[...],
                  preferred_element_type=jnp.float32) + bh_ref[...]
    out_ref[...] = out.astype(out_ref.dtype)


# --------------------------------------------------------------------------- #
# One-time parameter packing (lane-dense padding + fused head + bf16 cast)
# --------------------------------------------------------------------------- #
def pack_params(params, compute_dtype=jnp.bfloat16):
    """Pad hidden/out dims to 128 lanes, fuse the mu/logVar head into a single
    matmul, and cast the MXU operands to `compute_dtype`.  Call ONCE."""
    input_dim, hidden_dim = params["w1"].shape
    latent_dim = params["wmu"].shape[1]

    hid_p = _round_up(hidden_dim, 128)        # full-lane intermediate h
    out_p = _round_up(2 * latent_dim, 128)    # lane-dense fused head output

    def pad2(a, rows, cols):
        return jnp.pad(a, ((0, rows - a.shape[0]), (0, cols - a.shape[1])))

    packed = dict(
        w1=pad2(params["w1"], input_dim, hid_p).astype(compute_dtype),
        b1=pad2(params["b1"], 1, hid_p).astype(jnp.float32),
        w2=pad2(params["w2"], hid_p, hid_p).astype(compute_dtype),
        b2=pad2(params["b2"], 1, hid_p).astype(jnp.float32),
        wh=pad2(jnp.concatenate([params["wmu"], params["wlv"]], axis=1),
                hid_p, out_p).astype(compute_dtype),
        bh=pad2(jnp.concatenate([params["bmu"], params["blv"]], axis=1),
                1, out_p).astype(jnp.float32),
    )
    meta = dict(input_dim=input_dim, hidden_dim=hidden_dim,
                latent_dim=latent_dim, hid_p=hid_p, out_p=out_p,
                compute_dtype=compute_dtype)
    return packed, meta


# --------------------------------------------------------------------------- #
# Forward wrapper
# --------------------------------------------------------------------------- #
def encoder_forward(x, packed, meta, *, batch_tile=1024,
                    out_dtype=jnp.float32):
    """x: (B, input_dim) float32.  packed/meta: from pack_params (call once).
    Returns (mu, logVar), each (B, latent_dim) in `out_dtype`."""
    B, input_dim = x.shape
    assert input_dim == meta["input_dim"], "x width mismatch vs packed params"
    hid_p, out_p = meta["hid_p"], meta["out_p"]
    latent_dim = meta["latent_dim"]
    cdt = meta["compute_dtype"]

    vmem_cap, num_cores = _tpu_info()

    # ---------- batch tiling --------------------------------------------------
    bt = _pick_batch_tile(B, batch_tile, num_cores)
    B_pad = _round_up(B, bt)
    if B_pad != B:
        x = jnp.pad(x, ((0, B_pad - B), (0, 0)))   # only when B % bt != 0
    grid = (B_pad // bt,)

    def row_map(i):
        return (i, 0)

    def full_map(i):
        return (0, 0)

    in_specs = [
        pl.BlockSpec((bt, input_dim), row_map),       # x tile (raw f32)
        pl.BlockSpec((input_dim, hid_p), full_map),   # w1  (resident)
        pl.BlockSpec((1, hid_p), full_map),           # b1
        pl.BlockSpec((hid_p, hid_p), full_map),       # w2
        pl.BlockSpec((1, hid_p), full_map),           # b2
        pl.BlockSpec((hid_p, out_p), full_map),       # wmu||wlv (fused head)
        pl.BlockSpec((1, out_p), full_map),           # bmu||blv
    ]
    out_specs = pl.BlockSpec((bt, out_p), row_map)
    out_shape = jax.ShapeDtypeStruct((B_pad, out_p), out_dtype)

    # ---------- VMEM budget (capacity-aware, no double-counted safety) --------
    cds = jnp.dtype(cdt).itemsize
    ods = jnp.dtype(out_dtype).itemsize
    weight_bytes = (input_dim * hid_p + hid_p * hid_p + hid_p * out_p) * cds
    bias_bytes = (2 * hid_p + out_p) * 4
    io_bytes = 2 * bt * input_dim * 4 + 2 * bt * out_p * ods   # dbl-buffered tiles
    act_bytes = bt * hid_p * (4 + 4 + cds) + bt * input_dim * cds  # h live ranges
    budget = 2 * (weight_bytes + bias_bytes) + io_bytes + act_bytes
    vmem_limit = int(budget + budget // 4 + (4 << 20))    # +25% & scratch headroom
    vmem_limit = max(16 << 20, min(vmem_limit, int(vmem_cap * 0.9)))

    out = pl.pallas_call(
        encoder_kernel,
        grid=grid,
        in_specs=in_specs,
        out_specs=out_specs,
        out_shape=out_shape,
        compiler_params=pltpu.CompilerParams(
            dimension_semantics=("parallel",),
            vmem_limit_bytes=vmem_limit),
    )(x, packed["w1"], packed["b1"], packed["w2"], packed["b2"],
      packed["wh"], packed["bh"])

    out = out[:B]
    mu = out[:, :latent_dim]
    logvar = out[:, latent_dim:2 * latent_dim]
    return mu, logvar


# --------------------------------------------------------------------------- #
# Init + pure-JAX reference
# --------------------------------------------------------------------------- #
def init_params(key, input_dim, hidden_dim, latent_dim):
    """Deterministic init mimicking nn.Linear's U(-1/sqrt(fan_in), 1/sqrt(fan_in)).
    Weights are stored transposed: (in_features, out_features)."""
    keys = jax.random.split(key, 8)

    def linear(kw, kb, fan_in, fan_out):
        bound = 1.0 / jnp.sqrt(fan_in)
        w = jax.random.uniform(kw, (fan_in, fan_out), jnp.float32, -bound, bound)
        b = jax.random.uniform(kb, (1, fan_out), jnp.float32, -bound, bound)
        return w, b

    w1, b1 = linear(keys[0], keys[1], input_dim, hidden_dim)
    w2, b2 = linear(keys[2], keys[3], hidden_dim, hidden_dim)
    wmu, bmu = linear(keys[4], keys[5], hidden_dim, latent_dim)
    wlv, blv = linear(keys[6], keys[7], hidden_dim, latent_dim)
    return dict(w1=w1, b1=b1, w2=w2, b2=b2,
                wmu=wmu, bmu=bmu, wlv=wlv, blv=blv)


def encoder_ref(x, p):
    """Pure-JAX f32 reference for correctness check."""
    def lrelu(v):
        return jnp.where(v > 0, v, 0.2 * v)
    h = lrelu(x @ p["w1"] + p["b1"])
    h = lrelu(h @ p["w2"] + p["b2"])
    return h @ p["wmu"] + p["bmu"], h @ p["wlv"] + p["blv"]


if __name__ == "__main__":
    batch, input_dim, hidden_dim, latent_dim = 64, 32, 32, 16

    key = jax.random.PRNGKey(0)
    kx, kp = jax.random.split(key)
    x = jax.random.normal(kx, (batch, input_dim), jnp.float32)
    params = init_params(kp, input_dim, hidden_dim, latent_dim)

    # One-time packing (padding / head fusion / bf16 cast hoisted out of the
    # per-call path).
    packed, meta = pack_params(params)
    packed = jax.block_until_ready(packed)

    mu, logvar = encoder_forward(x, packed, meta)
    mu, logvar = jax.block_until_ready((mu, logvar))

    mu_ref, logvar_ref = encoder_ref(x, params)
    assert mu.shape == (batch, latent_dim) and logvar.shape == (batch, latent_dim)
    # bf16 MXU operands with f32 accumulation -> loose tolerance vs f32 ref.
    # (Deliberate: documented precision trade for halved weight/DMA traffic.)
    assert jnp.allclose(mu, mu_ref, atol=7.5e-2, rtol=5e-2), \
        float(jnp.max(jnp.abs(mu - mu_ref)))
    assert jnp.allclose(logvar, logvar_ref, atol=7.5e-2, rtol=5e-2), \
        float(jnp.max(jnp.abs(logvar - logvar_ref)))

    print("KERNEL_OK")
</pallas_src>

<mosaic_0001>
module attributes {stable_mosaic.version = 11 : i64} {
  func.func @encoder_kernel(%arg0: i32, %arg1: memref<64x32xf32, #tpu.memory_space<vmem>>, %arg2: memref<32x128xbf16, #tpu.memory_space<vmem>>, %arg3: memref<1x128xf32, #tpu.memory_space<vmem>>, %arg4: memref<128x128xbf16, #tpu.memory_space<vmem>>, %arg5: memref<1x128xf32, #tpu.memory_space<vmem>>, %arg6: memref<128x128xbf16, #tpu.memory_space<vmem>>, %arg7: memref<1x128xf32, #tpu.memory_space<vmem>>, %arg8: memref<64x128xf32, #tpu.memory_space<vmem>>) attributes {dimension_semantics = [#tpu.dimension_semantics<parallel>], iteration_bounds = array<i64: 1>, scalar_prefetch = 0 : i64, scratch_operands = 0 : i64, tpu.core_type = #tpu.core_type<tc>, window_params = [{transform_indices = @transform_0, window_bounds = array<i64: 64, 32>}, {pipeline_mode = #tpu.pipeline_mode<synchronous>, transform_indices = @transform_1, window_bounds = array<i64: 32, 128>}, {pipeline_mode = #tpu.pipeline_mode<synchronous>, transform_indices = @transform_2, window_bounds = array<i64: 1, 128>}, {pipeline_mode = #tpu.pipeline_mode<synchronous>, transform_indices = @transform_3, window_bounds = array<i64: 128, 128>}, {pipeline_mode = #tpu.pipeline_mode<synchronous>, transform_indices = @transform_4, window_bounds = array<i64: 1, 128>}, {pipeline_mode = #tpu.pipeline_mode<synchronous>, transform_indices = @transform_5, window_bounds = array<i64: 128, 128>}, {pipeline_mode = #tpu.pipeline_mode<synchronous>, transform_indices = @transform_6, window_bounds = array<i64: 1, 128>}, {transform_indices = @transform_7, window_bounds = array<i64: 64, 128>}]} {
    %c0 = arith.constant 0 : index
    %c0_0 = arith.constant 0 : index
    %0 = vector.load %arg1[%c0, %c0_0] : memref<64x32xf32, #tpu.memory_space<vmem>>, vector<64x32xf32>
    %1 = arith.truncf %0 : vector<64x32xf32> to vector<64x32xbf16>
    %c0_1 = arith.constant 0 : index
    %c0_2 = arith.constant 0 : index
    %2 = vector.load %arg2[%c0_1, %c0_2] : memref<32x128xbf16, #tpu.memory_space<vmem>>, vector<32x128xbf16>
    %cst = arith.constant dense<0.000000e+00> : vector<64x128xf32>
    %3 = tpu.matmul %1, %2, %cst {dimension_numbers = #tpu.dot_dimension_numbers<[1], [0], [0], [1], [0, 0, 1, 1], [], []>} : vector<64x32xbf16>, vector<32x128xbf16>, vector<64x128xf32> -> vector<64x128xf32>
    %c0_3 = arith.constant 0 : index
    %c0_4 = arith.constant 0 : index
    %4 = vector.load %arg3[%c0_3, %c0_4] : memref<1x128xf32, #tpu.memory_space<vmem>>, vector<1x128xf32>
    %5 = vector.broadcast %4 : vector<1x128xf32> to vector<64x128xf32>
    %6 = arith.addf %3, %5 : vector<64x128xf32>
    %cst_5 = arith.constant 0.000000e+00 : f32
    %7 = vector.broadcast %cst_5 : f32 to vector<64x128xf32>
    %8 = arith.cmpf ogt, %6, %7 : vector<64x128xf32>
    %cst_6 = arith.constant 2.000000e-01 : f32
    %9 = vector.broadcast %cst_6 : f32 to vector<64x128xf32>
    %10 = arith.mulf %9, %6 : vector<64x128xf32>
    %11 = arith.select %8, %6, %10 : vector<64x128xi1>, vector<64x128xf32>
    %12 = arith.truncf %11 : vector<64x128xf32> to vector<64x128xbf16>
    %c0_7 = arith.constant 0 : index
    %c0_8 = arith.constant 0 : index
    %13 = vector.load %arg4[%c0_7, %c0_8] : memref<128x128xbf16, #tpu.memory_space<vmem>>, vector<128x128xbf16>
    %cst_9 = arith.constant dense<0.000000e+00> : vector<64x128xf32>
    %14 = tpu.matmul %12, %13, %cst_9 {dimension_numbers = #tpu.dot_dimension_numbers<[1], [0], [0], [1], [0, 0, 1, 1], [], []>} : vector<64x128xbf16>, vector<128x128xbf16>, vector<64x128xf32> -> vector<64x128xf32>
    %c0_10 = arith.constant 0 : index
    %c0_11 = arith.constant 0 : index
    %15 = vector.load %arg5[%c0_10, %c0_11] : memref<1x128xf32, #tpu.memory_space<vmem>>, vector<1x128xf32>
    %16 = vector.broadcast %15 : vector<1x128xf32> to vector<64x128xf32>
    %17 = arith.addf %14, %16 : vector<64x128xf32>
    %cst_12 = arith.constant 0.000000e+00 : f32
    %18 = vector.broadcast %cst_12 : f32 to vector<64x128xf32>
    %19 = arith.cmpf ogt, %17, %18 : vector<64x128xf32>
    %cst_13 = arith.constant 2.000000e-01 : f32
    %20 = vector.broadcast %cst_13 : f32 to vector<64x128xf32>
    %21 = arith.mulf %20, %17 : vector<64x128xf32>
    %22 = arith.select %19, %17, %21 : vector<64x128xi1>, vector<64x128xf32>
    %23 = arith.truncf %22 : vector<64x128xf32> to vector<64x128xbf16>
    %c0_14 = arith.constant 0 : index
    %c0_15 = arith.constant 0 : index
    %24 = vector.load %arg6[%c0_14, %c0_15] : memref<128x128xbf16, #tpu.memory_space<vmem>>, vector<128x128xbf16>
    %cst_16 = arith.constant dense<0.000000e+00> : vector<64x128xf32>
    %25 = tpu.matmul %23, %24, %cst_16 {dimension_numbers = #tpu.dot_dimension_numbers<[1], [0], [0], [1], [0, 0, 1, 1], [], []>} : vector<64x128xbf16>, vector<128x128xbf16>, vector<64x128xf32> -> vector<64x128xf32>
    %c0_17 = arith.constant 0 : index
    %c0_18 = arith.constant 0 : index
    %26 = vector.load %arg7[%c0_17, %c0_18] : memref<1x128xf32, #tpu.memory_space<vmem>>, vector<1x128xf32>
    %27 = vector.broadcast %26 : vector<1x128xf32> to vector<64x128xf32>
    %28 = arith.addf %25, %27 : vector<64x128xf32>
    %c0_19 = arith.constant 0 : index
    %c0_20 = arith.constant 0 : index
    %29 = vector.load %arg8[%c0_19, %c0_20] : memref<64x128xf32, #tpu.memory_space<vmem>>, vector<64x128xf32>
    tpu.vector_store %arg8[%c0_19, %c0_20], %28 {strides = array<i32>} : memref<64x128xf32, #tpu.memory_space<vmem>>, vector<64x128xf32>,
    return
  }
  func.func @transform_0(%arg0: i32) -> (i32, i32) {
    %c0_i32 = arith.constant 0 : i32
    %c0_i32_0 = arith.constant 0 : i32
    return %arg0, %c0_i32 : i32, i32
  }
  func.func @transform_1(%arg0: i32) -> (i32, i32) {
    %c0_i32 = arith.constant 0 : i32
    %c0_i32_0 = arith.constant 0 : i32
    %c0_i32_1 = arith.constant 0 : i32
    return %c0_i32, %c0_i32_0 : i32, i32
  }
  func.func @transform_2(%arg0: i32) -> (i32, i32) {
    %c0_i32 = arith.constant 0 : i32
    %c0_i32_0 = arith.constant 0 : i32
    %c0_i32_1 = arith.constant 0 : i32
    return %c0_i32, %c0_i32_0 : i32, i32
  }
  func.func @transform_3(%arg0: i32) -> (i32, i32) {
    %c0_i32 = arith.constant 0 : i32
    %c0_i32_0 = arith.constant 0 : i32
    %c0_i32_1 = arith.constant 0 : i32
    return %c0_i32, %c0_i32_0 : i32, i32
  }
  func.func @transform_4(%arg0: i32) -> (i32, i32) {
    %c0_i32 = arith.constant 0 : i32
    %c0_i32_0 = arith.constant 0 : i32
    %c0_i32_1 = arith.constant 0 : i32
    return %c0_i32, %c0_i32_0 : i32, i32
  }
  func.func @transform_5(%arg0: i32) -> (i32, i32) {
    %c0_i32 = arith.constant 0 : i32
    %c0_i32_0 = arith.constant 0 : i32
    %c0_i32_1 = arith.constant 0 : i32
    return %c0_i32, %c0_i32_0 : i32, i32
  }
  func.func @transform_6(%arg0: i32) -> (i32, i32) {
    %c0_i32 = arith.constant 0 : i32
    %c0_i32_0 = arith.constant 0 : i32
    %c0_i32_1 = arith.constant 0 : i32
    return %c0_i32, %c0_i32_0 : i32, i32
  }
  func.func @transform_7(%arg0: i32) -> (i32, i32) {
    %c0_i32 = arith.constant 0 : i32
    %c0_i32_0 = arith.constant 0 : i32
    return %arg0, %c0_i32 : i32, i32
  }
}

</mosaic_0001>

<llo_original>
// kernel: tpu_custom_call.1
$region0: #{tpu_custom_call.1}
  #allocation0 [shape = 'u32[]', space=smem, size = 0x4, offset = 0x4, fixed_abs, tag = 'smem constant byte address 0x4 - core index']
  #allocation1 [shape = 'u32[72,128]{1,0:T(1,128)}', space=vmem, size = 0x9000, scoped, tag = 'internal scratch']
  %s0 = inlined_call_operand.vmem [shape: f32[64,32], index: 0, kind: input, shape index: {}]
  %s1 = inlined_call_operand.vmem [shape: bf16[32,128], index: 1, kind: input, shape index: {}]
  %s2 = inlined_call_operand.vmem [shape: f32[1,128], index: 2, kind: input, shape index: {}]
  %s3 = inlined_call_operand.vmem [shape: bf16[128,128], index: 3, kind: input, shape index: {}]
  %s4 = inlined_call_operand.vmem [shape: f32[1,128], index: 4, kind: input, shape index: {}]
  %s5 = inlined_call_operand.hbm [shape: bf16[128,128], index: 5, kind: input, shape index: {}]
  %s6 = inlined_call_operand.vmem [shape: f32[1,128], index: 6, kind: input, shape index: {}]
  %s7 = inlined_call_operand.hbm [shape: f32[64,128], index: 7, kind: output, shape index: {}]
  %s8 = sld [smem:[#allocation0]]
  $region42: #{tpu_custom_call.1} parent=0
    _
  %s10 = ssub.s32 1, %s8
  %s11 = scalar_select 0, %s10, %s8
  $region1: #{tpu_custom_call.1} parent=0
    #allocation2 [shape = 'u8[32768]{0}', space=vmem, size = 0x8000, scoped, tag = 'input window, operand 5, single buffered']
    #allocation3 [shape = 's32[1]{0}', space=sflag, size = 0x4, scoped, tag = 'scoped memory for tpu_custom_call.1']
    #allocation4 [shape = 's32[1]{0}', space=sflag, size = 0x4, scoped, tag = 'scoped memory for tpu_custom_call.1']
    #allocation5 [shape = 'u8[32768]{0}', space=vmem, size = 0x8000, scoped, tag = 'output window, operand 0, single buffered']
    %12 = vsyncpa [#allocation3], 0
    %13 = vsyncpa [#allocation4], 0
    // Predicated region
    $region2: #{tpu_custom_call.1} parent=1 // pred_check
      _
    $region3: #{tpu_custom_call.1} parent=1 // pred_check_branch
      %15 = sbr.rel (0) target = $region5
    $region4: #{tpu_custom_call.1} parent=1 // pred_region
      _
    $region5: #{tpu_custom_call.1} parent=1 // pred_fallthru
      _
    // Predicated region
    $region6: #{tpu_custom_call.1} parent=1 // pred_check
      _
    $region7: #{tpu_custom_call.1} parent=1 // pred_check_branch
      %17 = sbr.rel (0) target = $region9
    $region8: #{tpu_custom_call.1} parent=1 // pred_region
      _
    $region9: #{tpu_custom_call.1} parent=1 // pred_fallthru
      _
    // Predicated region
    $region10: #{tpu_custom_call.1} parent=1 // pred_check
      _
    $region11: #{tpu_custom_call.1} parent=1 // pred_check_branch
      %19 = sbr.rel (0) target = $region13
    $region12: #{tpu_custom_call.1} parent=1 // pred_region
      _
    $region13: #{tpu_custom_call.1} parent=1 // pred_fallthru
      _
    // Predicated region
    $region14: #{tpu_custom_call.1} parent=1 // pred_check
      _
    $region15: #{tpu_custom_call.1} parent=1 // pred_check_branch
      %21 = sbr.rel (0) target = $region17
    $region16: #{tpu_custom_call.1} parent=1 // pred_region
      _
    $region17: #{tpu_custom_call.1} parent=1 // pred_fallthru
      _
    // Predicated region
    $region18: #{tpu_custom_call.1} parent=1 // pred_check
      _
    $region19: #{tpu_custom_call.1} parent=1 // pred_check_branch
      %23 = sbr.rel (0) target = $region21
    $region20: #{tpu_custom_call.1} parent=1 // pred_region
      _
    $region21: #{tpu_custom_call.1} parent=1 // pred_fallthru
      _
    // Predicated region
    $region22: #{tpu_custom_call.1} parent=1 // pred_check
      _
    $region23: #{tpu_custom_call.1} parent=1 // pred_check_branch
      %25 = sbr.rel (0) target = $region25
    $region24: #{tpu_custom_call.1} parent=1 // pred_region
      %27 = vsyncadd [#allocation3], 0
      %s28 = sshll.u32 %s5, 4
      %s29 = int_to_ptr.hbm [resolvable:$true] %s28
      %s30 = sshll.u32 [#allocation2], 4
      %s31 = int_to_ptr.vmem [resolvable:$true] %s30
      %36 = dma.hbm_to_vmem [thread:$0]  %s29, 1024, %s31, [#allocation3], 64, 64, 4
    $region25: #{tpu_custom_call.1} parent=1 // pred_fallthru
      _
    // Predicated region
    $region26: #{tpu_custom_call.1} parent=1 // pred_check
      _
    $region27: #{tpu_custom_call.1} parent=1 // pred_check_branch
      %38 = sbr.rel (0) target = $region29
    $region28: #{tpu_custom_call.1} parent=1 // pred_region
      _
    $region29: #{tpu_custom_call.1} parent=1 // pred_fallthru
      _
    // Predicated region
    $region30: #{tpu_custom_call.1} parent=1 // pred_check
      _
    $region31: #{tpu_custom_call.1} parent=1 // pred_check_branch
      %40 = sbr.rel (0) target = $region33
    $region32: #{tpu_custom_call.1} parent=1 // pred_region
      %42 = dma.done [#allocation3], 1024
    $region33: #{tpu_custom_call.1} parent=1 // pred_fallthru
      _
    %v44 = vld [vmem:[%s0] sm:$0xff]
    %v45 = vld [vmem:[%s0 + $0x8] sm:$0xff]
    %v46 = vld [vmem:[%s0 + $0x10] sm:$0xff]
    %v47 = vld [vmem:[%s0 + $0x18] sm:$0xff]
    %v48 = vld [vmem:[%s0 + $0x20] sm:$0xff]
    %v49 = vld [vmem:[%s0 + $0x28] sm:$0xff]
    %v50 = vld [vmem:[%s0 + $0x30] sm:$0xff]
    %v51 = vld [vmem:[%s0 + $0x38] sm:$0xff]
    %v52 = vpack.c.bf16 %v45, %v44
    %v53 = vpack.c.bf16 %v47, %v46
    %v54 = vpack.c.bf16 %v49, %v48
    %v55 = vpack.c.bf16 %v51, %v50
    %v56 = vld [vmem:[%s1] sm:$0xf]
    %v57 = vld [vmem:[%s1 + $0x4] sm:$0xf]
    %v58 = vld [vmem:[%s1 + $0x8] sm:$0xf]
    %v59 = vld [vmem:[%s1 + $0xc] sm:$0xf]
    %v60 = vld [vmem:[%s2] sm:$0x1]
    %v62 = vperm.slane %v60, 0
    %v68 = vunpack.c.l.b16 %v56
    %v69 = vunpack.c.l.b16 %v57
    %v70 = vunpack.c.l.b16 %v58
    %v71 = vunpack.c.l.b16 %v59
    %v72 = vpack.c.b16 %v69, %v68
    %v73 = vpack.c.b16 %v71, %v70
    %vm76 = vcmask 261120
    %v78 = vsel %vm76, %v52, 0
    %v81 = vsel %vm76, %v53, 0
    %v84 = vsel %vm76, %v54, 0
    %v87 = vsel %vm76, %v55, 0
    %89 = vmatpush.bf16.msra.mxu0 0
    %90 = vmatpush.bf16.msra.mxu0 0
    %91 = vmatpush.bf16.msra.mxu0 0
    %92 = vmatpush.bf16.msra.mxu0 0
    %93 = vmatpush.bf16.msra.mxu0 0
    %94 = vmatpush.bf16.msra.mxu0 0
    %95 = vmatpush.bf16.msra.mxu0 %v73
    %96 = vmatpush.bf16.msra.mxu0 %v72
    %97 = vmatmul.bf16.gmra.mxu0 %v78
    %v98 = vpop.f32.mrf.mxu0
    %v99 = vadd.f32 %v62, %v98
    %v100 = vpop.f32.mrf.mxu0
    %v101 = vadd.f32 %v62, %v100
    %102 = vmatmul.bf16.gmra.mxu0 %v81
    %v103 = vpop.f32.mrf.mxu0
    %v104 = vadd.f32 %v62, %v103
    %v105 = vpop.f32.mrf.mxu0
    %v106 = vadd.f32 %v62, %v105
    %107 = vmatmul.bf16.gmra.mxu0 %v84
    %v108 = vpop.f32.mrf.mxu0
    %v109 = vadd.f32 %v62, %v108
    %v110 = vpop.f32.mrf.mxu0
    %v111 = vadd.f32 %v62, %v110
    %112 = vmatmul.bf16.gmra.mxu0 %v87
    %v113 = vpop.f32.mrf.mxu0
    %v114 = vadd.f32 %v62, %v113
    %v115 = vpop.f32.mrf.mxu0
    %v116 = vadd.f32 %v62, %v115
    %117 = vdwg.mxu0
    %vm118 = vcmp.gt.f32.partialorder %v99, 0.0
    %vm119 = vcmp.gt.f32.partialorder %v101, 0.0
    %vm120 = vcmp.gt.f32.partialorder %v104, 0.0
    %vm121 = vcmp.gt.f32.partialorder %v106, 0.0
    %vm122 = vcmp.gt.f32.partialorder %v109, 0.0
    %vm123 = vcmp.gt.f32.partialorder %v111, 0.0
    %vm124 = vcmp.gt.f32.partialorder %v114, 0.0
    %vm125 = vcmp.gt.f32.partialorder %v116, 0.0
    %v126 = vmul.f32 %v99, 0.2
    %v127 = vmul.f32 %v101, 0.2
    %v128 = vmul.f32 %v104, 0.2
    %v129 = vmul.f32 %v106, 0.2
    %v130 = vmul.f32 %v109, 0.2
    %v131 = vmul.f32 %v111, 0.2
    %v132 = vmul.f32 %v114, 0.2
    %v133 = vmul.f32 %v116, 0.2
    %v134 = vsel %vm118, %v99, %v126
    %v135 = vsel %vm119, %v101, %v127
    %v136 = vsel %vm120, %v104, %v128
    %v137 = vsel %vm121, %v106, %v129
    %v138 = vsel %vm122, %v109, %v130
    %v139 = vsel %vm123, %v111, %v131
    %v140 = vsel %vm124, %v114, %v132
    %v141 = vsel %vm125, %v116, %v133
    %v142 = vpack.c.bf16 %v135, %v134
    %v143 = vpack.c.bf16 %v137, %v136
    %v144 = vpack.c.bf16 %v139, %v138
    %v145 = vpack.c.bf16 %v141, %v140
    %v146 = vld [vmem:[%s3] sm:$0xf]
    %v147 = vld [vmem:[%s3 + $0x4] sm:$0xf]
    %v148 = vld [vmem:[%s3 + $0x8] sm:$0xf]
    %v149 = vld [vmem:[%s3 + $0xc] sm:$0xf]
    %v150 = vld [vmem:[%s3 + $0x10] sm:$0xf]
    %v151 = vld [vmem:[%s3 + $0x14] sm:$0xf]
    %v152 = vld [vmem:[%s3 + $0x18] sm:$0xf]
    %v153 = vld [vmem:[%s3 + $0x1c] sm:$0xf]
    %v154 = vld [vmem:[%s3 + $0x20] sm:$0xf]
    %v155 = vld [vmem:[%s3 + $0x24] sm:$0xf]
    %v156 = vld [vmem:[%s3 + $0x28] sm:$0xf]
    %v157 = vld [vmem:[%s3 + $0x2c] sm:$0xf]
    %v158 = vld [vmem:[%s3 + $0x30] sm:$0xf]
    %v159 = vld [vmem:[%s3 + $0x34] sm:$0xf]
    %v160 = vld [vmem:[%s3 + $0x38] sm:$0xf]
    %v161 = vld [vmem:[%s3 + $0x3c] sm:$0xf]
    %v162 = vld [vmem:[%s4] sm:$0x1]
    %v164 = vperm.slane %v162, 0
    %v182 = vunpack.c.l.b16 %v146
    %v183 = vunpack.c.l.b16 %v147
    %v184 = vunpack.c.l.b16 %v148
    %v185 = vunpack.c.l.b16 %v149
    %v186 = vunpack.c.l.b16 %v150
    %v187 = vunpack.c.l.b16 %v151
    %v188 = vunpack.c.l.b16 %v152
    %v189 = vunpack.c.l.b16 %v153
    %v190 = vunpack.c.l.b16 %v154
    %v191 = vunpack.c.l.b16 %v155
    %v192 = vunpack.c.l.b16 %v156
    %v193 = vunpack.c.l.b16 %v157
    %v194 = vunpack.c.l.b16 %v158
    %v195 = vunpack.c.l.b16 %v159
    %v196 = vunpack.c.l.b16 %v160
    %v197 = vunpack.c.l.b16 %v161
    %v198 = vpack.c.b16 %v183, %v182
    %v199 = vpack.c.b16 %v185, %v184
    %v200 = vpack.c.b16 %v187, %v186
    %v201 = vpack.c.b16 %v189, %v188
    %v202 = vpack.c.b16 %v191, %v190
    %v203 = vpack.c.b16 %v193, %v192
    %v204 = vpack.c.b16 %v195, %v194
    %v205 = vpack.c.b16 %v197, %v196
    %214 = vmatpush.bf16.msra.mxu0 %v205
    %215 = vmatpush.bf16.msra.mxu0 %v204
    %216 = vmatpush.bf16.msra.mxu0 %v203
    %217 = vmatpush.bf16.msra.mxu0 %v202
    %218 = vmatpush.bf16.msra.mxu0 %v201
    %219 = vmatpush.bf16.msra.mxu0 %v200
    %220 = vmatpush.bf16.msra.mxu0 %v199
    %221 = vmatpush.bf16.msra.mxu0 %v198
    %222 = vmatmul.bf16.gmra.mxu0 %v142
    %v223 = vpop.f32.mrf.mxu0
    %v224 = vadd.f32 %v164, %v223
    %v225 = vpop.f32.mrf.mxu0
    %v226 = vadd.f32 %v164, %v225
    %227 = vmatmul.bf16.gmra.mxu0 %v143
    %v228 = vpop.f32.mrf.mxu0
    %v229 = vadd.f32 %v164, %v228
    %v230 = vpop.f32.mrf.mxu0
    %v231 = vadd.f32 %v164, %v230
    %232 = vmatmul.bf16.gmra.mxu0 %v144
    %v233 = vpop.f32.mrf.mxu0
    %v234 = vadd.f32 %v164, %v233
    %v235 = vpop.f32.mrf.mxu0
    %v236 = vadd.f32 %v164, %v235
    %237 = vmatmul.bf16.gmra.mxu0 %v145
    %v238 = vpop.f32.mrf.mxu0
    %v239 = vadd.f32 %v164, %v238
    %v240 = vpop.f32.mrf.mxu0
    %v241 = vadd.f32 %v164, %v240
    %242 = vdwg.mxu0
    %vm243 = vcmp.gt.f32.partialorder %v224, 0.0
    %vm244 = vcmp.gt.f32.partialorder %v226, 0.0
    %vm245 = vcmp.gt.f32.partialorder %v229, 0.0
    %vm246 = vcmp.gt.f32.partialorder %v231, 0.0
    %vm247 = vcmp.gt.f32.partialorder %v234, 0.0
    %vm248 = vcmp.gt.f32.partialorder %v236, 0.0
    %vm249 = vcmp.gt.f32.partialorder %v239, 0.0
    %vm250 = vcmp.gt.f32.partialorder %v241, 0.0
    %v251 = vmul.f32 %v224, 0.2
    %v252 = vmul.f32 %v226, 0.2
    %v253 = vmul.f32 %v229, 0.2
    %v254 = vmul.f32 %v231, 0.2
    %v255 = vmul.f32 %v234, 0.2
    %v256 = vmul.f32 %v236, 0.2
    %v257 = vmul.f32 %v239, 0.2
    %v258 = vmul.f32 %v241, 0.2
    %v259 = vsel %vm243, %v224, %v251
    %v260 = vsel %vm244, %v226, %v252
    %v261 = vsel %vm245, %v229, %v253
    %v262 = vsel %vm246, %v231, %v254
    %v263 = vsel %vm247, %v234, %v255
    %v264 = vsel %vm248, %v236, %v256
    %v265 = vsel %vm249, %v239, %v257
    %v266 = vsel %vm250, %v241, %v258
    %v267 = vpack.c.bf16 %v260, %v259
    %v268 = vpack.c.bf16 %v262, %v261
    %v269 = vpack.c.bf16 %v264, %v263
    %v270 = vpack.c.bf16 %v266, %v265
    %v271 = vld [vmem:[#allocation2] sm:$0xf]
    %v272 = vld [vmem:[#allocation2 + $0x4] sm:$0xf]
    %v273 = vld [vmem:[#allocation2 + $0x8] sm:$0xf]
    %v274 = vld [vmem:[#allocation2 + $0xc] sm:$0xf]
    %v275 = vld [vmem:[#allocation2 + $0x10] sm:$0xf]
    %v276 = vld [vmem:[#allocation2 + $0x14] sm:$0xf]
    %v277 = vld [vmem:[#allocation2 + $0x18] sm:$0xf]
    %v278 = vld [vmem:[#allocation2 + $0x1c] sm:$0xf]
    %v279 = vld [vmem:[#allocation2 + $0x20] sm:$0xf]
    %v280 = vld [vmem:[#allocation2 + $0x24] sm:$0xf]
    %v281 = vld [vmem:[#allocation2 + $0x28] sm:$0xf]
    %v282 = vld [vmem:[#allocation2 + $0x2c] sm:$0xf]
    %v283 = vld [vmem:[#allocation2 + $0x30] sm:$0xf]
    %v284 = vld [vmem:[#allocation2 + $0x34] sm:$0xf]
    %v285 = vld [vmem:[#allocation2 + $0x38] sm:$0xf]
    %v286 = vld [vmem:[#allocation2 + $0x3c] sm:$0xf]
    %v287 = vld [vmem:[%s6] sm:$0x1]
    %v289 = vperm.slane %v287, 0
    %v307 = vunpack.c.l.b16 %v271
    %v308 = vunpack.c.l.b16 %v272
    %v309 = vunpack.c.l.b16 %v273
    %v310 = vunpack.c.l.b16 %v274
    %v311 = vunpack.c.l.b16 %v275
    %v312 = vunpack.c.l.b16 %v276
    %v313 = vunpack.c.l.b16 %v277
    %v314 = vunpack.c.l.b16 %v278
    %v315 = vunpack.c.l.b16 %v279
    %v316 = vunpack.c.l.b16 %v280
    %v317 = vunpack.c.l.b16 %v281
    %v318 = vunpack.c.l.b16 %v282
    %v319 = vunpack.c.l.b16 %v283
    %v320 = vunpack.c.l.b16 %v284
    %v321 = vunpack.c.l.b16 %v285
    %v322 = vunpack.c.l.b16 %v286
    %v323 = vpack.c.b16 %v308, %v307
    %v324 = vpack.c.b16 %v310, %v309
    %v325 = vpack.c.b16 %v312, %v311
    %v326 = vpack.c.b16 %v314, %v313
    %v327 = vpack.c.b16 %v316, %v315
    %v328 = vpack.c.b16 %v318, %v317
    %v329 = vpack.c.b16 %v320, %v319
    %v330 = vpack.c.b16 %v322, %v321
    %339 = vmatpush.bf16.msra.mxu0 %v330
    %340 = vmatpush.bf16.msra.mxu0 %v329
    %341 = vmatpush.bf16.msra.mxu0 %v328
    %342 = vmatpush.bf16.msra.mxu0 %v327
    %343 = vmatpush.bf16.msra.mxu0 %v326
    %344 = vmatpush.bf16.msra.mxu0 %v325
    %345 = vmatpush.bf16.msra.mxu0 %v324
    %346 = vmatpush.bf16.msra.mxu0 %v323
    %347 = vmatmul.bf16.gmra.mxu0 %v267
    %v348 = vpop.f32.mrf.mxu0
    %v349 = vadd.f32 %v289, %v348
    %v350 = vpop.f32.mrf.mxu0
    %v351 = vadd.f32 %v289, %v350
    %352 = vmatmul.bf16.gmra.mxu0 %v268
    %v353 = vpop.f32.mrf.mxu0
    %v354 = vadd.f32 %v289, %v353
    %v355 = vpop.f32.mrf.mxu0
    %v356 = vadd.f32 %v289, %v355
    %357 = vmatmul.bf16.gmra.mxu0 %v269
    %v358 = vpop.f32.mrf.mxu0
    %v359 = vadd.f32 %v289, %v358
    %v360 = vpop.f32.mrf.mxu0
    %v361 = vadd.f32 %v289, %v360
    %362 = vmatmul.bf16.gmra.mxu0 %v270
    %v363 = vpop.f32.mrf.mxu0
    %v364 = vadd.f32 %v289, %v363
    %v365 = vpop.f32.mrf.mxu0
    %v366 = vadd.f32 %v289, %v365
    %367 = vdwg.mxu0
    %368 = vst [vmem:[#allocation5] sm:$0xff] %v349
    %369 = vst [vmem:[#allocation5 + $0x8] sm:$0xff] %v351
    %370 = vst [vmem:[#allocation5 + $0x10] sm:$0xff] %v354
    %371 = vst [vmem:[#allocation5 + $0x18] sm:$0xff] %v356
    %372 = vst [vmem:[#allocation5 + $0x20] sm:$0xff] %v359
    %373 = vst [vmem:[#allocation5 + $0x28] sm:$0xff] %v361
    %374 = vst [vmem:[#allocation5 + $0x30] sm:$0xff] %v364
    %375 = vst [vmem:[#allocation5 + $0x38] sm:$0xff] %v366
    // Predicated region
    $region34: #{tpu_custom_call.1} parent=1 // pred_check
      _
    $region35: #{tpu_custom_call.1} parent=1 // pred_check_branch
      %377 = sbr.rel (0) target = $region37
    $region36: #{tpu_custom_call.1} parent=1 // pred_region
      %379 = vsyncadd [#allocation4], 0
      %s380 = sshll.u32 [#allocation5], 4
      %s381 = int_to_ptr.vmem [resolvable:$true] %s380
      %s382 = sshll.u32 %s7, 4
      %s383 = int_to_ptr.hbm [resolvable:$true] %s382
      %388 = dma.vmem_to_hbm [thread:$0]  %s381, 1024, %s383, [#allocation4], 128, 128, 8
    $region37: #{tpu_custom_call.1} parent=1 // pred_fallthru
      _
    // Predicated region
    $region38: #{tpu_custom_call.1} parent=1 // pred_check
      _
    $region39: #{tpu_custom_call.1} parent=1 // pred_check_branch
      %390 = sbr.rel (0) target = $region41
    $region40: #{tpu_custom_call.1} parent=1 // pred_region
      %392 = dma.done [#allocation4], 1024
    $region41: #{tpu_custom_call.1} parent=1 // pred_fallthru
      _
    %393 = vsyncpa [#allocation3], 1
    %394 = vsyncpa [#allocation4], 1

</llo_original>
